<compile_context>
chip_gen: v5e
topology: v5e:2x2
jax: 0.10.0
libtpu: 0.0.40
codegen_flags: <defaults>
</compile_context>

<pallas_src>
import jax
import jax.numpy as jnp
from jax.experimental import pallas as pl
from jax.experimental.pallas import tpu as pltpu


def _round_up(x, m):
    return (x + m - 1) // m * m


def _vmem_capacity_bytes():
    try:
        return int(pltpu.get_tpu_info().vmem_capacity_bytes)
    except Exception:
        return 64 << 20  # conservative default (v7x per-TensorCore VMEM)


def fc_relu_kernel(x_ref, w_ref, b_ref, o_ref):
    # x_ref: (tm, K) activations (input dtype), w_ref: (K, tn) pre-transposed
    # weights (compute dtype, bf16 by default), b_ref: (1, tn) f32 bias,
    # o_ref: (tm, tn) output tile.
    x = x_ref[...].astype(w_ref.dtype)  # in-kernel cast: no extra HBM pass on x
    h = jnp.dot(x, w_ref[...], preferred_element_type=jnp.float32)  # MXU, f32 acc
    # Fused f32 epilogue (bias + ReLU), single store with the cast on the way out.
    o_ref[...] = jnp.maximum(h + b_ref[...], 0.0).astype(o_ref.dtype)


def prepare_fc_params(weight, bias, *, compute_dtype=jnp.bfloat16):
    """One-time parameter prep (hoisted out of the per-call path).

    Transpose the PyTorch (out, in) weight to (in, out) and cast to the compute
    dtype (bf16 halves weight HBM traffic; f32 accumulation is kept in-kernel).
    No padding is needed: K and N use full-extent blocks in the kernel.
    """
    out_size, in_size = weight.shape
    w_t = jnp.asarray(weight).T.astype(compute_dtype)            # (K, N)
    b2d = jnp.asarray(bias).reshape(1, out_size).astype(jnp.float32)
    return w_t, b2d


def _choose_tn(out_size, max_tn):
    # Typical DGN hidden sizes: keep the whole N (and hence the whole weight)
    # resident. Only tile N when it is large and 128-aligned.
    if out_size <= max_tn or out_size % 128 != 0:
        return out_size
    for c in (max_tn, 512, 256, 128):
        if c <= max_tn and out_size % c == 0:
            return c
    return 128


def _choose_tm(batch, max_tm):
    if batch < 8:
        return batch  # full-dim block for tiny batches
    mp8 = _round_up(batch, 8)
    tm = min(max_tm, mp8)
    # v7x megacore: ensure the 'parallel' batch axis has >= 2 grid steps when the
    # batch is big enough to split (harmless on single-TC v5e/v6e).
    if pl.cdiv(mp8, tm) < 2 and mp8 >= 256:
        tm = max(8, _round_up(pl.cdiv(mp8, 2), 8))
    return tm


def _fc_layer_xla(x, w_t, b2d, out_dtype):
    h = jnp.dot(x.astype(w_t.dtype), w_t, preferred_element_type=jnp.float32)
    return jnp.maximum(h + b2d, 0.0).astype(out_dtype)


def fc_layer(x, w_t, b2d, *, out_dtype=None, max_tm=None, max_tn=512,
             min_pallas_elems=1 << 15, use_pallas=None):
    """relu(x @ W.T + b)  ==  FCLayer(activation='relu', dropout=0, b_norm=False)."""
    batch, k_in = x.shape
    k_w, out_size = w_t.shape
    assert k_in == k_w, "weight/activation feature-size mismatch"
    out_dtype = out_dtype or x.dtype

    # Small-problem fallback: pallas_call launch + pipeline overhead dominates
    # tiny layers; XLA's fused matmul is faster there.
    if use_pallas is None:
        use_pallas = batch * out_size >= min_pallas_elems
    if not use_pallas:
        return _fc_layer_xla(x, w_t, b2d, out_dtype)

    vmem_cap = _vmem_capacity_bytes()
    if max_tm is None:
        # 64 MiB VMEM per TC on v7x -> 512; 128 MiB on v5e/v6e -> 1024.
        max_tm = 512 if vmem_cap <= (64 << 20) else 1024

    tn = _choose_tn(out_size, max_tn)
    tm = _choose_tm(batch, max_tm)

    x_i = jnp.dtype(x.dtype).itemsize
    w_i = jnp.dtype(w_t.dtype).itemsize
    o_i = jnp.dtype(out_dtype).itemsize

    def vmem_need(tm_):
        # double-buffered x / w / bias / out tiles
        return 2 * (tm_ * k_in * x_i + k_in * tn * w_i + tn * 4 + tm_ * tn * o_i)

    vmem_budget = int(vmem_cap * 0.7)
    while tm > 8 and vmem_need(tm) > vmem_budget:
        tm = max(8, _round_up(tm // 2, 8))
    if vmem_need(tm) > vmem_budget:
        # Cannot fit even a minimal tile (enormous K*N): let XLA handle it.
        return _fc_layer_xla(x, w_t, b2d, out_dtype)
    vmem_limit = int(min(max(vmem_need(tm) * 2, 16 << 20), vmem_budget))

    gm = pl.cdiv(batch, tm)
    gn = pl.cdiv(out_size, tn)

    if gn == 1:
        # Common DGN case: whole (small) weight + bias stay VMEM-resident
        # (constant block index -> DMA'd once); only activations stream.
        grid = (gm,)
        in_specs = [
            pl.BlockSpec((tm, k_in), lambda i: (i, 0)),
            pl.BlockSpec((k_in, tn), lambda i: (0, 0)),
            pl.BlockSpec((1, tn), lambda i: (0, 0)),
        ]
        out_specs = pl.BlockSpec((tm, tn), lambda i: (i, 0))
        dims = ("parallel",)
    else:
        # Large N: tile the output; batch is the fastest-varying axis so the
        # weight/bias stripe stays resident across consecutive grid steps.
        grid = (gn, gm)
        in_specs = [
            pl.BlockSpec((tm, k_in), lambda j, i: (i, 0)),
            pl.BlockSpec((k_in, tn), lambda j, i: (0, j)),
            pl.BlockSpec((1, tn), lambda j, i: (0, j)),
        ]
        out_specs = pl.BlockSpec((tm, tn), lambda j, i: (i, j))
        dims = ("parallel", "parallel")

    return pl.pallas_call(
        fc_relu_kernel,
        out_shape=jax.ShapeDtypeStruct((batch, out_size), out_dtype),
        grid=grid,
        in_specs=in_specs,
        out_specs=out_specs,
        compiler_params=pltpu.CompilerParams(
            dimension_semantics=dims,
            vmem_limit_bytes=vmem_limit,
        ),
    )(x, w_t, b2d)


def reference_fc_layer(x, weight, bias):
    return jnp.maximum(x @ weight.T + bias[None, :], 0.0)


if __name__ == "__main__":
    key = jax.random.PRNGKey(0)
    kx, kw, kx2 = jax.random.split(key, 3)

    # Shapes implied by DGNLayerSimple: in_size = len(aggregators)*len(scalers)*in_dim.
    num_nodes = 500          # non-multiple-of-tile batch: exercises boundary masking
    in_dim, out_dim = 32, 64
    n_aggregators, n_scalers = 4, 1
    in_size = n_aggregators * n_scalers * in_dim   # 128

    x = jax.random.normal(kx, (num_nodes, in_size), dtype=jnp.float32)

    # Deterministic init mimicking FCLayer.reset_parameters:
    # xavier_uniform_(weight, gain=1/in_size); bias.zero_()
    limit = (1.0 / in_size) * jnp.sqrt(6.0 / (in_size + out_dim))
    weight = jax.random.uniform(
        kw, (out_dim, in_size), dtype=jnp.float32, minval=-limit, maxval=limit
    )
    bias = jnp.zeros((out_dim,), dtype=jnp.float32)

    # One-time parameter prep (transpose + bf16 cast), hoisted out of per-call path.
    w_t, b2d = prepare_fc_params(weight, bias)

    # Force the Pallas path at this (small) demo size.
    out = fc_layer(x, w_t, b2d, use_pallas=True)
    out = jax.block_until_ready(out)
    assert out.shape == (num_nodes, out_dim)
    assert out.dtype == x.dtype

    # Exact-arithmetic reference (same bf16-cast operands, f32 accumulation).
    ref_bf16 = jnp.maximum(
        jnp.dot(x.astype(w_t.dtype), w_t, preferred_element_type=jnp.float32) + b2d,
        0.0,
    )
    assert jnp.allclose(out, ref_bf16, atol=1e-5, rtol=1e-5)

    # Full-precision PyTorch-semantics reference (bf16 weight quantization error only).
    ref_f32 = reference_fc_layer(x, weight, bias)
    assert jnp.allclose(out, ref_f32, atol=2e-3, rtol=5e-2)

    # Small-problem path uses the XLA fallback and must also match.
    x_small = jax.random.normal(kx2, (8, in_size), dtype=jnp.float32)
    out_small = jax.block_until_ready(fc_layer(x_small, w_t, b2d))
    assert jnp.allclose(out_small, reference_fc_layer(x_small, weight, bias),
                        atol=2e-3, rtol=5e-2)

    print("KERNEL_OK")
</pallas_src>

<mosaic_0001>
module attributes {stable_mosaic.version = 11 : i64} {
  func.func @fc_relu_kernel(%arg0: i32, %arg1: memref<256x128xf32, #tpu.memory_space<vmem>>, %arg2: memref<128x64xbf16, #tpu.memory_space<vmem>>, %arg3: memref<1x64xf32, #tpu.memory_space<vmem>>, %arg4: memref<256x64xf32, #tpu.memory_space<vmem>>) attributes {dimension_semantics = [#tpu.dimension_semantics<parallel>], iteration_bounds = array<i64: 2>, scalar_prefetch = 0 : i64, scratch_operands = 0 : i64, tpu.core_type = #tpu.core_type<tc>, window_params = [{transform_indices = @transform_0, window_bounds = array<i64: 256, 128>}, {pipeline_mode = #tpu.pipeline_mode<synchronous>, transform_indices = @transform_1, window_bounds = array<i64: 128, 64>}, {pipeline_mode = #tpu.pipeline_mode<synchronous>, transform_indices = @transform_2, window_bounds = array<i64: 1, 64>}, {transform_indices = @transform_3, window_bounds = array<i64: 256, 64>}]} {
    %c0 = arith.constant 0 : index
    %c0_0 = arith.constant 0 : index
    %0 = vector.load %arg1[%c0, %c0_0] : memref<256x128xf32, #tpu.memory_space<vmem>>, vector<256x128xf32>
    %1 = arith.truncf %0 : vector<256x128xf32> to vector<256x128xbf16>
    %c0_1 = arith.constant 0 : index
    %c0_2 = arith.constant 0 : index
    %2 = vector.load %arg2[%c0_1, %c0_2] : memref<128x64xbf16, #tpu.memory_space<vmem>>, vector<128x64xbf16>
    %cst = arith.constant dense<0.000000e+00> : vector<256x64xf32>
    %3 = tpu.matmul %1, %2, %cst {dimension_numbers = #tpu.dot_dimension_numbers<[1], [0], [0], [1], [0, 0, 1, 1], [], []>} : vector<256x128xbf16>, vector<128x64xbf16>, vector<256x64xf32> -> vector<256x64xf32>
    %c0_3 = arith.constant 0 : index
    %c0_4 = arith.constant 0 : index
    %4 = vector.load %arg3[%c0_3, %c0_4] : memref<1x64xf32, #tpu.memory_space<vmem>>, vector<1x64xf32>
    %5 = vector.broadcast %4 : vector<1x64xf32> to vector<256x64xf32>
    %6 = arith.addf %3, %5 : vector<256x64xf32>
    %cst_5 = arith.constant 0.000000e+00 : f32
    %7 = vector.broadcast %cst_5 : f32 to vector<256x64xf32>
    %8 = arith.maximumf %6, %7 : vector<256x64xf32>
    %c0_6 = arith.constant 0 : index
    %c0_7 = arith.constant 0 : index
    %9 = vector.load %arg4[%c0_6, %c0_7] : memref<256x64xf32, #tpu.memory_space<vmem>>, vector<256x64xf32>
    tpu.vector_store %arg4[%c0_6, %c0_7], %8 {strides = array<i32>} : memref<256x64xf32, #tpu.memory_space<vmem>>, vector<256x64xf32>,
    return
  }
  func.func @transform_0(%arg0: i32) -> (i32, i32) {
    %c0_i32 = arith.constant 0 : i32
    %c0_i32_0 = arith.constant 0 : i32
    return %arg0, %c0_i32 : i32, i32
  }
  func.func @transform_1(%arg0: i32) -> (i32, i32) {
    %c0_i32 = arith.constant 0 : i32
    %c0_i32_0 = arith.constant 0 : i32
    %c0_i32_1 = arith.constant 0 : i32
    return %c0_i32, %c0_i32_0 : i32, i32
  }
  func.func @transform_2(%arg0: i32) -> (i32, i32) {
    %c0_i32 = arith.constant 0 : i32
    %c0_i32_0 = arith.constant 0 : i32
    %c0_i32_1 = arith.constant 0 : i32
    return %c0_i32, %c0_i32_0 : i32, i32
  }
  func.func @transform_3(%arg0: i32) -> (i32, i32) {
    %c0_i32 = arith.constant 0 : i32
    %c0_i32_0 = arith.constant 0 : i32
    return %arg0, %c0_i32 : i32, i32
  }
}

</mosaic_0001>

<llo_original>
// kernel: tpu_custom_call.1
$region0: #{tpu_custom_call.1}
  #allocation0 [shape = 'u32[]', space=smem, size = 0x4, offset = 0x4, fixed_abs, tag = 'smem constant byte address 0x4 - core index']
  #allocation1 [shape = 'u32[72,128]{1,0:T(1,128)}', space=vmem, size = 0x9000, scoped, tag = 'internal scratch']
  %s0 = inlined_call_operand.hbm [shape: f32[500,128], index: 0, kind: input, shape index: {}]
  %s1 = inlined_call_operand.vmem [shape: bf16[128,64], index: 1, kind: input, shape index: {}]
  %s2 = inlined_call_operand.vmem [shape: f32[1,64], index: 2, kind: input, shape index: {}]
  %s3 = inlined_call_operand.vmem [shape: f32[500,64], index: 3, kind: output, shape index: {}]
  %s4 = sld [smem:[#allocation0]]
  $region97: #{tpu_custom_call.1} parent=0
    _
  %s6 = ssub.s32 1, %s4
  %s7 = scalar_select 0, %s6, %s4
  $region1: #{tpu_custom_call.1} parent=0
    #allocation2 [shape = 'u8[262144]{0}', space=vmem, size = 0x40000, scoped, tag = 'input window, operand 0']
    #allocation3 [shape = 's32[2]{0}', space=sflag, size = 0x8, scoped, tag = 'scoped memory for tpu_custom_call.1']
    #allocation4 [shape = 'u8[262144]{0}', space=vmem, size = 0x40000, scoped, tag = 'output window, operand 0']
    %8 = vsyncpa [#allocation3], 0
    %s9 = scalar_lea.sflag [#allocation3], 1
    %10 = vsyncpa %s9, 0
    loop: start=0, step=1, limit=4
    $region2: #{tpu_custom_call.1} parent=1 // loop_pre_header
      _
    $region3: #{tpu_custom_call.1} parent=1 // loop_header
      %s12 = sphi 0, %s16
      %p13 = scmp.ge.s32.totalorder %s12, 4
      %s22 = sphi 0, %s24
      %s25 = sphi 0, %s22
      %s26 = sphi 0, %s25
      %s42 = sphi 0, %s26
      %s46 = sphi 0, %s46
      %s48 = sphi 0, %s46
      %s49 = sphi 0, %s48
      %s63 = sphi 0, %s49
      %s67 = sphi 0, %s67
      %s69 = sphi 0, %s67
      %s70 = sphi 0, %s69
      %s84 = sphi 0, %s70
      %s90 = sphi 0, %s92
      %s93 = sphi 0, %s90
      %s94 = sphi 0, %s93
      %s110 = sphi 0, %s94
    $region4: #{tpu_custom_call.1} parent=1 // loop_header_branch
      %15 = sbr.rel (%p13) target = $region8
    $region5: #{tpu_custom_call.1} parent=1 // loop_body
      %s17 = ssub.s32 %s12, 1
      %s18 = ssub.s32 %s12, 2
      %s19 = sadd.s32 %s12, 1
      %s20 = ssub.s32 %s12, %s19
      %p21 = scmp.eq.s32.totalorder %s20, 0
      %s23 = sadd.s32 %s22, 1
      %s24 = scalar_select %p21, %s22, %s23
      %p27 = pneg %p21
      %p28 = scmp.eq.s32.totalorder %s12, 1
      %p29 = por %p27, %p28
      %p30 = scmp.ne.s32.totalorder %s22, %s25
      %p31 = scmp.eq.s32.totalorder %s12, 0
      %p32 = por %p30, %p31
      %p33 = scmp.ne.s32.totalorder %s22, %s25
      %p34 = scmp.eq.s32.totalorder %s17, 1
      %p35 = por %p33, %p34
      %p36 = scmp.ne.s32.totalorder %s25, %s26
      %p37 = scmp.eq.s32.totalorder %s17, 0
      %p38 = por %p36, %p37
      %p39 = scmp.ne.s32.totalorder %s25, %s26
      %p40 = scmp.eq.s32.totalorder %s18, 1
      %p41 = por %p39, %p40
      %p43 = scmp.ne.s32.totalorder %s26, %s42
      %p44 = scmp.eq.s32.totalorder %s18, 0
      %p45 = por %p43, %p44
      %s47 = sadd.s32 %s46, 1
      %p50 = scmp.eq.s32.totalorder %s12, 1
      %p51 = scmp.ne.s32.totalorder %s46, %s48
      %p52 = scmp.eq.s32.totalorder %s12, 0
      %p53 = por %p51, %p52
      %p54 = scmp.ne.s32.totalorder %s46, %s48
      %p55 = scmp.eq.s32.totalorder %s17, 1
      %p56 = por %p54, %p55
      %p57 = scmp.ne.s32.totalorder %s48, %s49
      %p58 = scmp.eq.s32.totalorder %s17, 0
      %p59 = por %p57, %p58
      %p60 = scmp.ne.s32.totalorder %s48, %s49
      %p61 = scmp.eq.s32.totalorder %s18, 1
      %p62 = por %p60, %p61
      %p64 = scmp.ne.s32.totalorder %s49, %s63
      %p65 = scmp.eq.s32.totalorder %s18, 0
      %p66 = por %p64, %p65
      %s68 = sadd.s32 %s67, 1
      %p71 = scmp.eq.s32.totalorder %s12, 1
      %p72 = scmp.ne.s32.totalorder %s67, %s69
      %p73 = scmp.eq.s32.totalorder %s12, 0
      %p74 = por %p72, %p73
      %p75 = scmp.ne.s32.totalorder %s67, %s69
      %p76 = scmp.eq.s32.totalorder %s17, 1
      %p77 = por %p75, %p76
      %p78 = scmp.ne.s32.totalorder %s69, %s70
      %p79 = scmp.eq.s32.totalorder %s17, 0
      %p80 = por %p78, %p79
      %p81 = scmp.ne.s32.totalorder %s69, %s70
      %p82 = scmp.eq.s32.totalorder %s18, 1
      %p83 = por %p81, %p82
      %p85 = scmp.ne.s32.totalorder %s70, %s84
      %p86 = scmp.eq.s32.totalorder %s18, 0
      %p87 = por %p85, %p86
      %s88 = ssub.s32 %s12, %s19
      %p89 = scmp.eq.s32.totalorder %s88, 0
      %s91 = sadd.s32 %s90, 1
      %s92 = scalar_select %p89, %s90, %s91
      %p95 = pneg %p89
      %p96 = scmp.eq.s32.totalorder %s12, 1
      %p97 = por %p95, %p96
      %p98 = scmp.ne.s32.totalorder %s90, %s93
      %p99 = scmp.eq.s32.totalorder %s12, 0
      %p100 = por %p98, %p99
      %p101 = scmp.ne.s32.totalorder %s90, %s93
      %p102 = scmp.eq.s32.totalorder %s17, 1
      %p103 = por %p101, %p102
      %p104 = scmp.ne.s32.totalorder %s93, %s94
      %p105 = scmp.eq.s32.totalorder %s17, 0
      %p106 = por %p104, %p105
      %p107 = scmp.ne.s32.totalorder %s93, %s94
      %p108 = scmp.eq.s32.totalorder %s18, 1
      %p109 = por %p107, %p108
      %p111 = scmp.ne.s32.totalorder %s94, %s110
      %p112 = scmp.eq.s32.totalorder %s18, 0
      %p113 = por %p111, %p112
      %p114 = scmp.le.s32.totalorder 1, %s12
      %p115 = scmp.lt.s32.totalorder %s12, 3
      %p116 = pnand %p114, %p115
      %p117 = pneg %p116
      // Predicated region
      $region9: #{tpu_custom_call.1} parent=5 // pred_check
        _
      $region10: #{tpu_custom_call.1} parent=5 // pred_check_branch
        %119 = sbr.rel (%p116) target = $region12
      $region11: #{tpu_custom_call.1} parent=5 // pred_region
        %s120 = ssub.s32 %s12, 1
        // Predicated region
        $region13: #{tpu_custom_call.1} parent=11 // pred_check
          %p121 = pneg %p59
        $region14: #{tpu_custom_call.1} parent=11 // pred_check_branch
          %123 = sbr.rel (%p121) target = $region16
        $region15: #{tpu_custom_call.1} parent=11 // pred_region
          _
        $region16: #{tpu_custom_call.1} parent=11 // pred_fallthru
          _
        // Predicated region
        $region17: #{tpu_custom_call.1} parent=11 // pred_check
          %p124 = pneg %p80
        $region18: #{tpu_custom_call.1} parent=11 // pred_check_branch
          %126 = sbr.rel (%p124) target = $region20
        $region19: #{tpu_custom_call.1} parent=11 // pred_region
          _
        $region20: #{tpu_custom_call.1} parent=11 // pred_fallthru
          _
      $region12: #{tpu_custom_call.1} parent=5 // pred_fallthru
        _
      %p127 = scmp.lt.s32.totalorder %s12, 2
      // Predicated region
      $region21: #{tpu_custom_call.1} parent=5 // pred_check
        %p128 = pneg %p127
      $region22: #{tpu_custom_call.1} parent=5 // pred_check_branch
        %130 = sbr.rel (%p128) target = $region24
      $region23: #{tpu_custom_call.1} parent=5 // pred_region
        // Predicated region
        $region25: #{tpu_custom_call.1} parent=23 // pred_check
          %p131 = pneg %p32
        $region26: #{tpu_custom_call.1} parent=23 // pred_check_branch
          %133 = sbr.rel (%p131) target = $region28
        $region27: #{tpu_custom_call.1} parent=23 // pred_region
          %s134 = sand.u32 %s22, 1
          %s135 = scalar_lea.sflag [#allocation3], %s134
          %s136 = sand.u32 %s22, 1
          %s137 = smul.addr %s136, 256
          %s138 = scalar_lea.vmem [#allocation2], %s137
          %s139 = smul.u32 32, %s12
          %s140 = ssub.s32 63, %s139
          %p141 = scmp.lt.s32.totalorder %s140, 32
          %s142 = scalar_select %p141, %s140, 32
          %s143 = smul.u32 8, %s142
          %s144 = ssub.s32 256, %s143
          %s145 = sshll.u32 %s144, 4
          %146 = vsyncadd %s135, %s145
          %p147 = scmp.ne.s32.totalorder 0, %s143
          %s148 = smul.addr %s139, 8
          %s149 = scalar_lea.hbm %s0, %s148
          %s150 = smul.u32 8, %s142
          %s151 = sshll.u32 %s149, 4
          %s152 = int_to_ptr.hbm [resolvable:$true] %s151
          %s153 = sshll.u32 %s138, 4
          %s154 = int_to_ptr.vmem [resolvable:$true] %s153
          %s155 = sshll.u32 %s150, 4
          %159 = dma.hbm_to_vmem [thread:$0]  (%p147), %s152, %s155, %s154, %s135, 128, 128, 8
        $region28: #{tpu_custom_call.1} parent=23 // pred_fallthru
          _
      $region24: #{tpu_custom_call.1} parent=5 // pred_fallthru
        _
      %p160 = scmp.le.s32.totalorder 1, %s12
      %p161 = scmp.lt.s32.totalorder %s12, 3
      %p162 = pnand %p160, %p161
      %p163 = pneg %p162
      // Predicated region
      $region29: #{tpu_custom_call.1} parent=5 // pred_check
        _
      $region30: #{tpu_custom_call.1} parent=5 // pred_check_branch
        %165 = sbr.rel (%p162) target = $region32
      $region31: #{tpu_custom_call.1} parent=5 // pred_region
        %s166 = ssub.s32 %s12, 1
        %s167 = sand.u32 %s25, 1
        %s168 = scalar_lea.sflag [#allocation3], %s167
        %s169 = sand.u32 %s25, 1
        %s170 = smul.addr %s169, 256
        %s171 = scalar_lea.vmem [#allocation2], %s170
        // Predicated region
        $region33: #{tpu_custom_call.1} parent=31 // pred_check
          %p172 = pneg %p38
        $region34: #{tpu_custom_call.1} parent=31 // pred_check_branch
          %174 = sbr.rel (%p172) target = $region36
        $region35: #{tpu_custom_call.1} parent=31 // pred_region
          %176 = dma.done %s168, 4096
        $region36: #{tpu_custom_call.1} parent=31 // pred_fallthru
          _
        %s177 = sand.u32 %s25, 1
        %s178 = scalar_lea.sflag [#allocation3], %s177
        %s179 = sand.u32 %s25, 1
        %s180 = smul.addr %s179, 256
        %s181 = scalar_lea.vmem [#allocation2], %s180
        %p182 = pneg %p38
        %p183 = pneg %p35
        %p184 = pneg %p59
        %p185 = pneg %p56
        %p186 = pneg %p80
        %p187 = pneg %p77
        %p188 = pneg %p106
        %p189 = pneg %p103
        %s190 = sand.u32 %s93, 1
        %s191 = sand.u32 %s93, 1
        %s192 = smul.addr %s191, 256
        %s193 = scalar_lea.vmem [#allocation4], %s192
        %s194 = smul.u32 32, %s17
        %s195 = ssub.s32 63, %s194
        %p196 = scmp.lt.s32.totalorder %s195, 32
        %s197 = scalar_select %p196, %s195, 32
        %s198 = smul.u32 8, %s197
        %s199 = smul.u32 32, %s17
        %s200 = ssub.s32 63, %s199
        %p201 = scmp.lt.s32.totalorder %s200, 32
        %s202 = scalar_select %p201, %s200, 32
        %s203 = smul.u32 8, %s202
        %v204 = vld [vmem:[%s171] sm:$0xff]
        %v205 = vld [vmem:[%s171 + $0x8] sm:$0xff]
        %v206 = vld [vmem:[%s171 + $0x10] sm:$0xff]
        %v207 = vld [vmem:[%s171 + $0x18] sm:$0xff]
        %v208 = vld [vmem:[%s171 + $0x20] sm:$0xff]
        %v209 = vld [vmem:[%s171 + $0x28] sm:$0xff]
        %v210 = vld [vmem:[%s171 + $0x30] sm:$0xff]
        %v211 = vld [vmem:[%s171 + $0x38] sm:$0xff]
        %v212 = vld [vmem:[%s171 + $0x40] sm:$0xff]
        %v213 = vld [vmem:[%s171 + $0x48] sm:$0xff]
        %v214 = vld [vmem:[%s171 + $0x50] sm:$0xff]
        %v215 = vld [vmem:[%s171 + $0x58] sm:$0xff]
        %v216 = vld [vmem:[%s171 + $0x60] sm:$0xff]
        %v217 = vld [vmem:[%s171 + $0x68] sm:$0xff]
        %v218 = vld [vmem:[%s171 + $0x70] sm:$0xff]
        %v219 = vld [vmem:[%s171 + $0x78] sm:$0xff]
        %v220 = vld [vmem:[%s171 + $0x80] sm:$0xff]
        %v221 = vld [vmem:[%s171 + $0x88] sm:$0xff]
        %v222 = vld [vmem:[%s171 + $0x90] sm:$0xff]
        %v223 = vld [vmem:[%s171 + $0x98] sm:$0xff]
        %v224 = vld [vmem:[%s171 + $0xa0] sm:$0xff]
        %v225 = vld [vmem:[%s171 + $0xa8] sm:$0xff]
        %v226 = vld [vmem:[%s171 + $0xb0] sm:$0xff]
        %v227 = vld [vmem:[%s171 + $0xb8] sm:$0xff]
        %v228 = vld [vmem:[%s171 + $0xc0] sm:$0xff]
        %v229 = vld [vmem:[%s171 + $0xc8] sm:$0xff]
        %v230 = vld [vmem:[%s171 + $0xd0] sm:$0xff]
        %v231 = vld [vmem:[%s171 + $0xd8] sm:$0xff]
        %v232 = vld [vmem:[%s171 + $0xe0] sm:$0xff]
        %v233 = vld [vmem:[%s171 + $0xe8] sm:$0xff]
        %v234 = vld [vmem:[%s171 + $0xf0] sm:$0xff]
        %v235 = vld [vmem:[%s171 + $0xf8] sm:$0xff]
        %v236 = vpack.c.bf16 %v205, %v204
        %v237 = vpack.c.bf16 %v207, %v206
        %v238 = vpack.c.bf16 %v209, %v208
        %v239 = vpack.c.bf16 %v211, %v210
        %v240 = vpack.c.bf16 %v213, %v212
        %v241 = vpack.c.bf16 %v215, %v214
        %v242 = vpack.c.bf16 %v217, %v216
        %v243 = vpack.c.bf16 %v219, %v218
        %v244 = vpack.c.bf16 %v221, %v220
        %v245 = vpack.c.bf16 %v223, %v222
        %v246 = vpack.c.bf16 %v225, %v224
        %v247 = vpack.c.bf16 %v227, %v226
        %v248 = vpack.c.bf16 %v229, %v228
        %v249 = vpack.c.bf16 %v231, %v230
        %v250 = vpack.c.bf16 %v233, %v232
        %v251 = vpack.c.bf16 %v235, %v234
        %v252 = vld [vmem:[%s1] sm:$0xf]
        %v253 = vld [vmem:[%s1 + $0x4] sm:$0xf]
        %v254 = vld [vmem:[%s1 + $0x8] sm:$0xf]
        %v255 = vld [vmem:[%s1 + $0xc] sm:$0xf]
        %v256 = vld [vmem:[%s1 + $0x10] sm:$0xf]
        %v257 = vld [vmem:[%s1 + $0x14] sm:$0xf]
        %v258 = vld [vmem:[%s1 + $0x18] sm:$0xf]
        %v259 = vld [vmem:[%s1 + $0x1c] sm:$0xf]
        %v260 = vld [vmem:[%s1 + $0x20] sm:$0xf]
        %v261 = vld [vmem:[%s1 + $0x24] sm:$0xf]
        %v262 = vld [vmem:[%s1 + $0x28] sm:$0xf]
        %v263 = vld [vmem:[%s1 + $0x2c] sm:$0xf]
        %v264 = vld [vmem:[%s1 + $0x30] sm:$0xf]
        %v265 = vld [vmem:[%s1 + $0x34] sm:$0xf]
        %v266 = vld [vmem:[%s1 + $0x38] sm:$0xf]
        %v267 = vld [vmem:[%s1 + $0x3c] sm:$0xf]
        %v268 = vld [vmem:[%s2] sm:$0x1]
        %v270 = vperm.slane %v268, 0
        %v288 = vunpack.c.l.b16 %v252
        %v289 = vunpack.c.l.b16 %v253
        %v290 = vunpack.c.l.b16 %v254
        %v291 = vunpack.c.l.b16 %v255
        %v292 = vunpack.c.l.b16 %v256
        %v293 = vunpack.c.l.b16 %v257
        %v294 = vunpack.c.l.b16 %v258
        %v295 = vunpack.c.l.b16 %v259
        %v296 = vunpack.c.l.b16 %v260
        %v297 = vunpack.c.l.b16 %v261
        %v298 = vunpack.c.l.b16 %v262
        %v299 = vunpack.c.l.b16 %v263
        %v300 = vunpack.c.l.b16 %v264
        %v301 = vunpack.c.l.b16 %v265
        %v302 = vunpack.c.l.b16 %v266
        %v303 = vunpack.c.l.b16 %v267
        %v304 = vpack.c.b16 %v289, %v288
        %v305 = vpack.c.b16 %v291, %v290
        %v306 = vpack.c.b16 %v293, %v292
        %v307 = vpack.c.b16 %v295, %v294
        %v308 = vpack.c.b16 %v297, %v296
        %v309 = vpack.c.b16 %v299, %v298
        %v310 = vpack.c.b16 %v301, %v300
        %v311 = vpack.c.b16 %v303, %v302
        %320 = vmatpush.bf16.msra.mxu0 %v311
        %321 = vmatpush.bf16.msra.mxu0 %v310
        %322 = vmatpush.bf16.msra.mxu0 %v309
        %323 = vmatpush.bf16.msra.mxu0 %v308
        %324 = vmatpush.bf16.msra.mxu0 %v307
        %325 = vmatpush.bf16.msra.mxu0 %v306
        %326 = vmatpush.bf16.msra.mxu0 %v305
        %327 = vmatpush.bf16.msra.mxu0 %v304
        %328 = vmatmul.bf16.gmra.mxu0 %v236
        %v329 = vpop.f32.mrf.mxu0
        %v330 = vadd.f32 %v270, %v329
        %v331 = vpop.f32.mrf.mxu0
        %v332 = vadd.f32 %v270, %v331
        %333 = vmatmul.bf16.gmra.mxu0 %v237
        %v334 = vpop.f32.mrf.mxu0
        %v335 = vadd.f32 %v270, %v334
        %v336 = vpop.f32.mrf.mxu0
        %v337 = vadd.f32 %v270, %v336
        %338 = vmatmul.bf16.gmra.mxu0 %v238
        %v339 = vpop.f32.mrf.mxu0
        %v340 = vadd.f32 %v270, %v339
        %v341 = vpop.f32.mrf.mxu0
        %v342 = vadd.f32 %v270, %v341
        %343 = vmatmul.bf16.gmra.mxu0 %v239
        %v344 = vpop.f32.mrf.mxu0
        %v345 = vadd.f32 %v270, %v344
        %v346 = vpop.f32.mrf.mxu0
        %v347 = vadd.f32 %v270, %v346
        %348 = vmatmul.bf16.gmra.mxu0 %v240
        %v349 = vpop.f32.mrf.mxu0
        %v350 = vadd.f32 %v270, %v349
        %v351 = vpop.f32.mrf.mxu0
        %v352 = vadd.f32 %v270, %v351
        %353 = vmatmul.bf16.gmra.mxu0 %v241
        %v354 = vpop.f32.mrf.mxu0
        %v355 = vadd.f32 %v270, %v354
        %v356 = vpop.f32.mrf.mxu0
        %v357 = vadd.f32 %v270, %v356
        %358 = vmatmul.bf16.gmra.mxu0 %v242
        %v359 = vpop.f32.mrf.mxu0
        %v360 = vadd.f32 %v270, %v359
        %v361 = vpop.f32.mrf.mxu0
        %v362 = vadd.f32 %v270, %v361
        %363 = vmatmul.bf16.gmra.mxu0 %v243
        %v364 = vpop.f32.mrf.mxu0
        %v365 = vadd.f32 %v270, %v364
        %v366 = vpop.f32.mrf.mxu0
        %v367 = vadd.f32 %v270, %v366
        %368 = vmatmul.bf16.gmra.mxu0 %v244
        %v369 = vpop.f32.mrf.mxu0
        %v370 = vadd.f32 %v270, %v369
        %v371 = vpop.f32.mrf.mxu0
        %v372 = vadd.f32 %v270, %v371
        %373 = vmatmul.bf16.gmra.mxu0 %v245
        %v374 = vpop.f32.mrf.mxu0
        %v375 = vadd.f32 %v270, %v374
        %v376 = vpop.f32.mrf.mxu0
        %v377 = vadd.f32 %v270, %v376
        %378 = vmatmul.bf16.gmra.mxu0 %v246
        %v379 = vpop.f32.mrf.mxu0
        %v380 = vadd.f32 %v270, %v379
        %v381 = vpop.f32.mrf.mxu0
        %v382 = vadd.f32 %v270, %v381
        %383 = vmatmul.bf16.gmra.mxu0 %v247
        %v384 = vpop.f32.mrf.mxu0
        %v385 = vadd.f32 %v270, %v384
        %v386 = vpop.f32.mrf.mxu0
        %v387 = vadd.f32 %v270, %v386
        %388 = vmatmul.bf16.gmra.mxu0 %v248
        %v389 = vpop.f32.mrf.mxu0
        %v390 = vadd.f32 %v270, %v389
        %v391 = vpop.f32.mrf.mxu0
        %v392 = vadd.f32 %v270, %v391
        %393 = vmatmul.bf16.gmra.mxu0 %v249
        %v394 = vpop.f32.mrf.mxu0
        %v395 = vadd.f32 %v270, %v394
        %v396 = vpop.f32.mrf.mxu0
        %v397 = vadd.f32 %v270, %v396
        %398 = vmatmul.bf16.gmra.mxu0 %v250
        %v399 = vpop.f32.mrf.mxu0
        %v400 = vadd.f32 %v270, %v399
        %v401 = vpop.f32.mrf.mxu0
        %v402 = vadd.f32 %v270, %v401
        %403 = vmatmul.bf16.gmra.mxu0 %v251
        %v404 = vpop.f32.mrf.mxu0
        %v405 = vadd.f32 %v270, %v404
        %v406 = vpop.f32.mrf.mxu0
        %v407 = vadd.f32 %v270, %v406
        %408 = vdwg.mxu0
        %v409 = vmax.f32 %v330, 0.0
        %v410 = vmax.f32 %v332, 0.0
        %v411 = vmax.f32 %v335, 0.0
        %v412 = vmax.f32 %v337, 0.0
        %v413 = vmax.f32 %v340, 0.0
        %v414 = vmax.f32 %v342, 0.0
        %v415 = vmax.f32 %v345, 0.0
        %v416 = vmax.f32 %v347, 0.0
        %v417 = vmax.f32 %v350, 0.0
        %v418 = vmax.f32 %v352, 0.0
        %v419 = vmax.f32 %v355, 0.0
        %v420 = vmax.f32 %v357, 0.0
        %v421 = vmax.f32 %v360, 0.0
        %v422 = vmax.f32 %v362, 0.0
        %v423 = vmax.f32 %v365, 0.0
        %v424 = vmax.f32 %v367, 0.0
        %v425 = vmax.f32 %v370, 0.0
        %v426 = vmax.f32 %v372, 0.0
        %v427 = vmax.f32 %v375, 0.0
        %v428 = vmax.f32 %v377, 0.0
        %v429 = vmax.f32 %v380, 0.0
        %v430 = vmax.f32 %v382, 0.0
        %v431 = vmax.f32 %v385, 0.0
        %v432 = vmax.f32 %v387, 0.0
        %v433 = vmax.f32 %v390, 0.0
        %v434 = vmax.f32 %v392, 0.0
        %v435 = vmax.f32 %v395, 0.0
        %v436 = vmax.f32 %v397, 0.0
        %v437 = vmax.f32 %v400, 0.0
        %v438 = vmax.f32 %v402, 0.0
        %v439 = vmax.f32 %v405, 0.0
        %v440 = vmax.f32 %v407, 0.0
        %vm441 = vcmask 523264
        %442 = vst.msk [vmem:[%s193] sm:$0xff] %vm441, %v409
        %443 = vst.msk [vmem:[%s193 + $0x8] sm:$0xff] %vm441, %v410
        %444 = vst.msk [vmem:[%s193 + $0x10] sm:$0xff] %vm441, %v411
        %445 = vst.msk [vmem:[%s193 + $0x18] sm:$0xff] %vm441, %v412
        %446 = vst.msk [vmem:[%s193 + $0x20] sm:$0xff] %vm441, %v413
        %447 = vst.msk [vmem:[%s193 + $0x28] sm:$0xff] %vm441, %v414
        %448 = vst.msk [vmem:[%s193 + $0x30] sm:$0xff] %vm441, %v415
        %449 = vst.msk [vmem:[%s193 + $0x38] sm:$0xff] %vm441, %v416
        %450 = vst.msk [vmem:[%s193 + $0x40] sm:$0xff] %vm441, %v417
        %451 = vst.msk [vmem:[%s193 + $0x48] sm:$0xff] %vm441, %v418
        %452 = vst.msk [vmem:[%s193 + $0x50] sm:$0xff] %vm441, %v419
        %453 = vst.msk [vmem:[%s193 + $0x58] sm:$0xff] %vm441, %v420
        %454 = vst.msk [vmem:[%s193 + $0x60] sm:$0xff] %vm441, %v421
        %455 = vst.msk [vmem:[%s193 + $0x68] sm:$0xff] %vm441, %v422
        %456 = vst.msk [vmem:[%s193 + $0x70] sm:$0xff] %vm441, %v423
        %457 = vst.msk [vmem:[%s193 + $0x78] sm:$0xff] %vm441, %v424
        %458 = vst.msk [vmem:[%s193 + $0x80] sm:$0xff] %vm441, %v425
        %459 = vst.msk [vmem:[%s193 + $0x88] sm:$0xff] %vm441, %v426
        %460 = vst.msk [vmem:[%s193 + $0x90] sm:$0xff] %vm441, %v427
        %461 = vst.msk [vmem:[%s193 + $0x98] sm:$0xff] %vm441, %v428
        %462 = vst.msk [vmem:[%s193 + $0xa0] sm:$0xff] %vm441, %v429
        %463 = vst.msk [vmem:[%s193 + $0xa8] sm:$0xff] %vm441, %v430
        %464 = vst.msk [vmem:[%s193 + $0xb0] sm:$0xff] %vm441, %v431
        %465 = vst.msk [vmem:[%s193 + $0xb8] sm:$0xff] %vm441, %v432
        %466 = vst.msk [vmem:[%s193 + $0xc0] sm:$0xff] %vm441, %v433
        %467 = vst.msk [vmem:[%s193 + $0xc8] sm:$0xff] %vm441, %v434
        %468 = vst.msk [vmem:[%s193 + $0xd0] sm:$0xff] %vm441, %v435
        %469 = vst.msk [vmem:[%s193 + $0xd8] sm:$0xff] %vm441, %v436
        %470 = vst.msk [vmem:[%s193 + $0xe0] sm:$0xff] %vm441, %v437
        %471 = vst.msk [vmem:[%s193 + $0xe8] sm:$0xff] %vm441, %v438
        %472 = vst.msk [vmem:[%s193 + $0xf0] sm:$0xff] %vm441, %v439
        %473 = vst.msk [vmem:[%s193 + $0xf8] sm:$0xff] %vm441, %v440
        %s474 = sand.u32 %s93, 1
        %s475 = sand.u32 %s93, 1
        %s476 = smul.addr %s475, 256
        %s477 = scalar_lea.vmem [#allocation4], %s476
        // Predicated region
        $region37: #{tpu_custom_call.1} parent=31 // pred_check
          %p478 = pneg %p103
        $region38: #{tpu_custom_call.1} parent=31 // pred_check_branch
          %480 = sbr.rel (%p478) target = $region40
        $region39: #{tpu_custom_call.1} parent=31 // pred_region
          %s481 = smul.u32 32, %s17
          %s482 = ssub.s32 63, %s481
          %p483 = scmp.lt.s32.totalorder %s482, 32
          %s484 = scalar_select %p483, %s482, 32
          %s485 = smul.u32 8, %s484
          %p486 = scmp.ne.s32.totalorder 0, %s485
          %s487 = smul.addr %s481, 8
          %s488 = scalar_lea.vmem %s3, %s487
          // Predicated region
          $region41: #{tpu_custom_call.1} parent=39 // pred_check
            %p489 = pneg %p486
          $region42: #{tpu_custom_call.1} parent=39 // pred_check_branch
            %491 = sbr.rel (%p489) target = $region44
          $region43: #{tpu_custom_call.1} parent=39 // pred_region
            // Predicated region
            $region45: #{tpu_custom_call.1} parent=43 // pred_check
              _
            $region46: #{tpu_custom_call.1} parent=43 // pred_check_branch
              %493 = sbr.rel (0) target = $region48
            $region47: #{tpu_custom_call.1} parent=43 // pred_region
              // Predicated region
              $region67: #{tpu_custom_call.1} parent=47 // pred_check
                _
              $region68: #{tpu_custom_call.1} parent=47 // pred_check_branch
                %605 = sbr.rel (0) target = $region70
              $region69: #{tpu_custom_call.1} parent=47 // pred_region
                %s606 = sshrl.u32 %s484, 5
                // While loop
                $region71: #{tpu_custom_call.1} parent=69 // loop_pre_header
                  _
                $region72: #{tpu_custom_call.1} parent=69 // loop_header
                  %s608 = sphi 0, %s610
                  %p609 = scmp.ge.s32.totalorder %s608, %s606
                  %s613 = sphi 0, %s682
                  %s614 = sphi %s477, %s685
                  %s615 = sphi %s488, %s686
                $region73: #{tpu_custom_call.1} parent=69 // loop_header_branch
                  %612 = sbr.rel (%p609) target = $region77
                $region74: #{tpu_custom_call.1} parent=69 // loop_body
                  %v616 = vld [vmem:[%s614] sm:$0xff]
                  %617 = vst [vmem:[%s615] sm:$0xff] %v616
                  %v618 = vld [vmem:[%s614 + $0x8] sm:$0xff]
                  %619 = vst [vmem:[%s615 + $0x8] sm:$0xff] %v618
                  %v620 = vld [vmem:[%s614 + $0x10] sm:$0xff]
                  %621 = vst [vmem:[%s615 + $0x10] sm:$0xff] %v620
                  %v622 = vld [vmem:[%s614 + $0x18] sm:$0xff]
                  %623 = vst [vmem:[%s615 + $0x18] sm:$0xff] %v622
                  %v624 = vld [vmem:[%s614 + $0x20] sm:$0xff]
                  %625 = vst [vmem:[%s615 + $0x20] sm:$0xff] %v624
                  %v626 = vld [vmem:[%s614 + $0x28] sm:$0xff]
                  %627 = vst [vmem:[%s615 + $0x28] sm:$0xff] %v626
                  %v628 = vld [vmem:[%s614 + $0x30] sm:$0xff]
                  %629 = vst [vmem:[%s615 + $0x30] sm:$0xff] %v628
                  %v630 = vld [vmem:[%s614 + $0x38] sm:$0xff]
                  %631 = vst [vmem:[%s615 + $0x38] sm:$0xff] %v630
                  %v632 = vld [vmem:[%s614 + $0x40] sm:$0xff]
                  %633 = vst [vmem:[%s615 + $0x40] sm:$0xff] %v632
                  %v634 = vld [vmem:[%s614 + $0x48] sm:$0xff]
                  %635 = vst [vmem:[%s615 + $0x48] sm:$0xff] %v634
                  %v636 = vld [vmem:[%s614 + $0x50] sm:$0xff]
                  %637 = vst [vmem:[%s615 + $0x50] sm:$0xff] %v636
                  %v638 = vld [vmem:[%s614 + $0x58] sm:$0xff]
                  %639 = vst [vmem:[%s615 + $0x58] sm:$0xff] %v638
                  %v640 = vld [vmem:[%s614 + $0x60] sm:$0xff]
                  %641 = vst [vmem:[%s615 + $0x60] sm:$0xff] %v640
                  %v642 = vld [vmem:[%s614 + $0x68] sm:$0xff]
                  %643 = vst [vmem:[%s615 + $0x68] sm:$0xff] %v642
                  %v644 = vld [vmem:[%s614 + $0x70] sm:$0xff]
                  %645 = vst [vmem:[%s615 + $0x70] sm:$0xff] %v644
                  %v646 = vld [vmem:[%s614 + $0x78] sm:$0xff]
                  %647 = vst [vmem:[%s615 + $0x78] sm:$0xff] %v646
                  %v648 = vld [vmem:[%s614 + $0x80] sm:$0xff]
                  %649 = vst [vmem:[%s615 + $0x80] sm:$0xff] %v648
                  %v650 = vld [vmem:[%s614 + $0x88] sm:$0xff]
                  %651 = vst [vmem:[%s615 + $0x88] sm:$0xff] %v650
                  %v652 = vld [vmem:[%s614 + $0x90] sm:$0xff]
                  %653 = vst [vmem:[%s615 + $0x90] sm:$0xff] %v652
                  %v654 = vld [vmem:[%s614 + $0x98] sm:$0xff]
                  %655 = vst [vmem:[%s615 + $0x98] sm:$0xff] %v654
                  %v656 = vld [vmem:[%s614 + $0xa0] sm:$0xff]
                  %657 = vst [vmem:[%s615 + $0xa0] sm:$0xff] %v656
                  %v658 = vld [vmem:[%s614 + $0xa8] sm:$0xff]
                  %659 = vst [vmem:[%s615 + $0xa8] sm:$0xff] %v658
                  %v660 = vld [vmem:[%s614 + $0xb0] sm:$0xff]
                  %661 = vst [vmem:[%s615 + $0xb0] sm:$0xff] %v660
                  %v662 = vld [vmem:[%s614 + $0xb8] sm:$0xff]
                  %663 = vst [vmem:[%s615 + $0xb8] sm:$0xff] %v662
                  %v664 = vld [vmem:[%s614 + $0xc0] sm:$0xff]
                  %665 = vst [vmem:[%s615 + $0xc0] sm:$0xff] %v664
                  %v666 = vld [vmem:[%s614 + $0xc8] sm:$0xff]
                  %667 = vst [vmem:[%s615 + $0xc8] sm:$0xff] %v666
                  %v668 = vld [vmem:[%s614 + $0xd0] sm:$0xff]
                  %669 = vst [vmem:[%s615 + $0xd0] sm:$0xff] %v668
                  %v670 = vld [vmem:[%s614 + $0xd8] sm:$0xff]
                  %671 = vst [vmem:[%s615 + $0xd8] sm:$0xff] %v670
                  %v672 = vld [vmem:[%s614 + $0xe0] sm:$0xff]
                  %673 = vst [vmem:[%s615 + $0xe0] sm:$0xff] %v672
                  %v674 = vld [vmem:[%s614 + $0xe8] sm:$0xff]
                  %675 = vst [vmem:[%s615 + $0xe8] sm:$0xff] %v674
                  %v676 = vld [vmem:[%s614 + $0xf0] sm:$0xff]
                  %677 = vst [vmem:[%s615 + $0xf0] sm:$0xff] %v676
                  %v678 = vld [vmem:[%s614 + $0xf8] sm:$0xff]
                  %679 = vst [vmem:[%s615 + $0xf8] sm:$0xff] %v678
                  %s680 = sadd.s32 1, %s613
                  %p681 = scmp.ge.s32.totalorder %s680, %s606
                  %s682 = scalar_select %p681, 0, %s680
                  %s683 = smul.u32 %s682, 256
                  %s684 = smul.u32 %s682, 256
                  %s685 = scalar_lea.vmem %s477, %s683 [#allocation4]
                  %s686 = scalar_lea.vmem %s488, %s684
                $region75: #{tpu_custom_call.1} parent=69 // loop_footer
                  %s610 = sadd.s32 %s608, 1
                $region76: #{tpu_custom_call.1} parent=69 // loop_footer_branch
                  %607 = sbr.rel target = $region72
                $region77: #{tpu_custom_call.1} parent=69 // loop_exit
                  _
                %s687 = sshrl.u32 %s484, 5
                %s688 = sand.u32 %s484, 31
                %s689 = smul.u32 %s687, 32
                %s690 = smul.u32 8, %s689
                %s691 = scalar_lea.vmem %s477, %s690 [#allocation4]
                %s692 = smul.u32 8, %s689
                %s693 = scalar_lea.vmem %s488, %s692
                // While loop
                $region78: #{tpu_custom_call.1} parent=69 // loop_pre_header
                  _
                $region79: #{tpu_custom_call.1} parent=69 // loop_header
                  %s695 = sphi 0, %s697
                  %p696 = scmp.ge.s32.totalorder %s695, %s688
                  %s700 = sphi 0, %s707
                  %s701 = sphi %s691, %s710
                  %s702 = sphi %s693, %s711
                $region80: #{tpu_custom_call.1} parent=69 // loop_header_branch
                  %699 = sbr.rel (%p696) target = $region84
                $region81: #{tpu_custom_call.1} parent=69 // loop_body
                  %v703 = vld [vmem:[%s701] sm:$0xff]
                  %704 = vst [vmem:[%s702] sm:$0xff] %v703
                  %s705 = sadd.s32 1, %s700
                  %p706 = scmp.ge.s32.totalorder %s705, %s688
                  %s707 = scalar_select %p706, 0, %s705
                  %s708 = smul.u32 %s707, 8
                  %s709 = smul.u32 %s707, 8
                  %s710 = scalar_lea.vmem %s691, %s708 [#allocation4]
                  %s711 = scalar_lea.vmem %s693, %s709
                $region82: #{tpu_custom_call.1} parent=69 // loop_footer
                  %s697 = sadd.s32 %s695, 1
                $region83: #{tpu_custom_call.1} parent=69 // loop_footer_branch
                  %694 = sbr.rel target = $region79
                $region84: #{tpu_custom_call.1} parent=69 // loop_exit
                  _
              $region70: #{tpu_custom_call.1} parent=47 // pred_fallthru
                _
              // Predicated region
              $region85: #{tpu_custom_call.1} parent=47 // pred_check
                _
              $region86: #{tpu_custom_call.1} parent=47 // pred_check_branch
                %713 = sbr.rel target = $region88
              $region87: #{tpu_custom_call.1} parent=47 // pred_region
                _
              $region88: #{tpu_custom_call.1} parent=47 // pred_fallthru
                _
            $region48: #{tpu_custom_call.1} parent=43 // pred_fallthru
              _
            // Predicated region
            $region49: #{tpu_custom_call.1} parent=43 // pred_check
              _
            $region50: #{tpu_custom_call.1} parent=43 // pred_check_branch
              %495 = sbr.rel target = $region52
            $region51: #{tpu_custom_call.1} parent=43 // pred_region
              %s497 = ssub.s32 256, 1
              %s498 = sshrl.u32 %s484, 5
              // While loop
              $region53: #{tpu_custom_call.1} parent=51 // loop_pre_header
                _
              $region54: #{tpu_custom_call.1} parent=51 // loop_header
                %s500 = sphi 0, %s502
                %p501 = scmp.ge.s32.totalorder %s500, %s498
                %s505 = sphi 0, %s574
                %s506 = sphi %s477, %s577
                %s507 = sphi %s488, %s578
              $region55: #{tpu_custom_call.1} parent=51 // loop_header_branch
                %504 = sbr.rel (%p501) target = $region59
              $region56: #{tpu_custom_call.1} parent=51 // loop_body
                %v508 = vld [vmem:[%s506] sm:%s497]
                %509 = vst [vmem:[%s507] sm:%s497] %v508
                %v510 = vld [vmem:[%s506 + $0x8] sm:%s497]
                %511 = vst [vmem:[%s507 + $0x8] sm:%s497] %v510
                %v512 = vld [vmem:[%s506 + $0x10] sm:%s497]
                %513 = vst [vmem:[%s507 + $0x10] sm:%s497] %v512
                %v514 = vld [vmem:[%s506 + $0x18] sm:%s497]
                %515 = vst [vmem:[%s507 + $0x18] sm:%s497] %v514
                %v516 = vld [vmem:[%s506 + $0x20] sm:%s497]
                %517 = vst [vmem:[%s507 + $0x20] sm:%s497] %v516
                %v518 = vld [vmem:[%s506 + $0x28] sm:%s497]
                %519 = vst [vmem:[%s507 + $0x28] sm:%s497] %v518
                %v520 = vld [vmem:[%s506 + $0x30] sm:%s497]
                %521 = vst [vmem:[%s507 + $0x30] sm:%s497] %v520
                %v522 = vld [vmem:[%s506 + $0x38] sm:%s497]
                %523 = vst [vmem:[%s507 + $0x38] sm:%s497] %v522
                %v524 = vld [vmem:[%s506 + $0x40] sm:%s497]
                %525 = vst [vmem:[%s507 + $0x40] sm:%s497] %v524
                %v526 = vld [vmem:[%s506 + $0x48] sm:%s497]
                %527 = vst [vmem:[%s507 + $0x48] sm:%s497] %v526
                %v528 = vld [vmem:[%s506 + $0x50] sm:%s497]
                %529 = vst [vmem:[%s507 + $0x50] sm:%s497] %v528
                %v530 = vld [vmem:[%s506 + $0x58] sm:%s497]
                %531 = vst [vmem:[%s507 + $0x58] sm:%s497] %v530
                %v532 = vld [vmem:[%s506 + $0x60] sm:%s497]
                %533 = vst [vmem:[%s507 + $0x60] sm:%s497] %v532
                %v534 = vld [vmem:[%s506 + $0x68] sm:%s497]
                %535 = vst [vmem:[%s507 + $0x68] sm:%s497] %v534
                %v536 = vld [vmem:[%s506 + $0x70] sm:%s497]
                %537 = vst [vmem:[%s507 + $0x70] sm:%s497] %v536
                %v538 = vld [vmem:[%s506 + $0x78] sm:%s497]
                %539 = vst [vmem:[%s507 + $0x78] sm:%s497] %v538
                %v540 = vld [vmem:[%s506 + $0x80] sm:%s497]
                %541 = vst [vmem:[%s507 + $0x80] sm:%s497] %v540
                %v542 = vld [vmem:[%s506 + $0x88] sm:%s497]
                %543 = vst [vmem:[%s507 + $0x88] sm:%s497] %v542
                %v544 = vld [vmem:[%s506 + $0x90] sm:%s497]
                %545 = vst [vmem:[%s507 + $0x90] sm:%s497] %v544
                %v546 = vld [vmem:[%s506 + $0x98] sm:%s497]
                %547 = vst [vmem:[%s507 + $0x98] sm:%s497] %v546
                %v548 = vld [vmem:[%s506 + $0xa0] sm:%s497]
                %549 = vst [vmem:[%s507 + $0xa0] sm:%s497] %v548
                %v550 = vld [vmem:[%s506 + $0xa8] sm:%s497]
                %551 = vst [vmem:[%s507 + $0xa8] sm:%s497] %v550
                %v552 = vld [vmem:[%s506 + $0xb0] sm:%s497]
                %553 = vst [vmem:[%s507 + $0xb0] sm:%s497] %v552
                %v554 = vld [vmem:[%s506 + $0xb8] sm:%s497]
                %555 = vst [vmem:[%s507 + $0xb8] sm:%s497] %v554
                %v556 = vld [vmem:[%s506 + $0xc0] sm:%s497]
                %557 = vst [vmem:[%s507 + $0xc0] sm:%s497] %v556
                %v558 = vld [vmem:[%s506 + $0xc8] sm:%s497]
                %559 = vst [vmem:[%s507 + $0xc8] sm:%s497] %v558
                %v560 = vld [vmem:[%s506 + $0xd0] sm:%s497]
                %561 = vst [vmem:[%s507 + $0xd0] sm:%s497] %v560
                %v562 = vld [vmem:[%s506 + $0xd8] sm:%s497]
                %563 = vst [vmem:[%s507 + $0xd8] sm:%s497] %v562
                %v564 = vld [vmem:[%s506 + $0xe0] sm:%s497]
                %565 = vst [vmem:[%s507 + $0xe0] sm:%s497] %v564
                %v566 = vld [vmem:[%s506 + $0xe8] sm:%s497]
                %567 = vst [vmem:[%s507 + $0xe8] sm:%s497] %v566
                %v568 = vld [vmem:[%s506 + $0xf0] sm:%s497]
                %569 = vst [vmem:[%s507 + $0xf0] sm:%s497] %v568
                %v570 = vld [vmem:[%s506 + $0xf8] sm:%s497]
                %571 = vst [vmem:[%s507 + $0xf8] sm:%s497] %v570
                %s572 = sadd.s32 1, %s505
                %p573 = scmp.ge.s32.totalorder %s572, %s498
                %s574 = scalar_select %p573, 0, %s572
                %s575 = smul.u32 %s574, 256
                %s576 = smul.u32 %s574, 256
                %s577 = scalar_lea.vmem %s477, %s575 [#allocation4]
                %s578 = scalar_lea.vmem %s488, %s576
              $region57: #{tpu_custom_call.1} parent=51 // loop_footer
                %s502 = sadd.s32 %s500, 1
              $region58: #{tpu_custom_call.1} parent=51 // loop_footer_branch
                %499 = sbr.rel target = $region54
              $region59: #{tpu_custom_call.1} parent=51 // loop_exit
                _
              %s579 = sshrl.u32 %s484, 5
              %s580 = sand.u32 %s484, 31
              %s581 = smul.u32 %s579, 32
              %s582 = smul.u32 8, %s581
              %s583 = scalar_lea.vmem %s477, %s582 [#allocation4]
              %s584 = smul.u32 8, %s581
              %s585 = scalar_lea.vmem %s488, %s584
              // While loop
              $region60: #{tpu_custom_call.1} parent=51 // loop_pre_header
                _
              $region61: #{tpu_custom_call.1} parent=51 // loop_header
                %s587 = sphi 0, %s589
                %p588 = scmp.ge.s32.totalorder %s587, %s580
                %s592 = sphi 0, %s599
                %s593 = sphi %s583, %s602
                %s594 = sphi %s585, %s603
              $region62: #{tpu_custom_call.1} parent=51 // loop_header_branch
                %591 = sbr.rel (%p588) target = $region66
              $region63: #{tpu_custom_call.1} parent=51 // loop_body
                %v595 = vld [vmem:[%s593] sm:%s497]
                %596 = vst [vmem:[%s594] sm:%s497] %v595
                %s597 = sadd.s32 1, %s592
                %p598 = scmp.ge.s32.totalorder %s597, %s580
                %s599 = scalar_select %p598, 0, %s597
                %s600 = smul.u32 %s599, 8
                %s601 = smul.u32 %s599, 8
                %s602 = scalar_lea.vmem %s583, %s600 [#allocation4]
                %s603 = scalar_lea.vmem %s585, %s601
              $region64: #{tpu_custom_call.1} parent=51 // loop_footer
                %s589 = sadd.s32 %s587, 1
              $region65: #{tpu_custom_call.1} parent=51 // loop_footer_branch
                %586 = sbr.rel target = $region61
              $region66: #{tpu_custom_call.1} parent=51 // loop_exit
                _
            $region52: #{tpu_custom_call.1} parent=43 // pred_fallthru
              _
          $region44: #{tpu_custom_call.1} parent=39 // pred_fallthru
            _
          %714 = vnop
        $region40: #{tpu_custom_call.1} parent=31 // pred_fallthru
          _
      $region32: #{tpu_custom_call.1} parent=5 // pred_fallthru
        _
      %p715 = scmp.le.s32.totalorder 2, %s12
      // Predicated region
      $region89: #{tpu_custom_call.1} parent=5 // pred_check
        %p716 = pneg %p715
      $region90: #{tpu_custom_call.1} parent=5 // pred_check_branch
        %718 = sbr.rel (%p716) target = $region92
      $region91: #{tpu_custom_call.1} parent=5 // pred_region
        %s719 = ssub.s32 %s12, 2
        // Predicated region
        $region93: #{tpu_custom_call.1} parent=91 // pred_check
          %p720 = pneg %p109
        $region94: #{tpu_custom_call.1} parent=91 // pred_check_branch
          %722 = sbr.rel (%p720) target = $region96
        $region95: #{tpu_custom_call.1} parent=91 // pred_region
          %s723 = sand.u32 %s94, 1
          %s724 = sand.u32 %s94, 1
          %s725 = smul.addr %s724, 256
          %s726 = scalar_lea.vmem [#allocation4], %s725
        $region96: #{tpu_custom_call.1} parent=91 // pred_fallthru
          _
      $region92: #{tpu_custom_call.1} parent=5 // pred_fallthru
        _
    $region6: #{tpu_custom_call.1} parent=1 // loop_footer
      %s16 = sadd.s32 1, %s12
    $region7: #{tpu_custom_call.1} parent=1 // loop_footer_branch
      %11 = sbr.rel target = $region3
    $region8: #{tpu_custom_call.1} parent=1 // loop_exit
      _
    %727 = vsyncpa [#allocation3], 1
    %s728 = scalar_lea.sflag [#allocation3], 1
    %729 = vsyncpa %s728, 1

</llo_original>
